<compile_context>
chip_gen: v7x
topology: tpu7x:2x2x1
jax: 0.10.0
libtpu: 0.0.40
codegen_flags: <defaults>
</compile_context>

<pallas_src>
import functools

import jax
import jax.numpy as jnp
from jax.experimental import pallas as pl
from jax.experimental.pallas import tpu as pltpu

# `settings.kl_weight` / `settings.entropy_weight` are module-level globals in the
# original repo; fixed here as deterministic constants.
KL_WEIGHT = 0.1
ENTROPY_WEIGHT = 0.1
GUMBEL_TAU = 1.0
EPS = 1e-7
VMEM_LIMIT_BYTES = 48 * 1024 * 1024   # explicit budget, safe on v7x (64 MiB physical)


def _fused_kernel(x_ref, w1_ref, b1_ref, w2_ref, b2_ref, protos_ref, psq_ref, g_ref,
                  out_ref, feat_ref, ssum_ref, lsum_ref, sse_ref,
                  *, num_tokens, proto_dim):
    T, D = num_tokens, proto_dim
    TB = x_ref.shape[0]
    K = protos_ref.shape[0]
    n_rows = T * TB

    # ---- feature extractor: Linear -> ReLU -> Linear (bf16 MXU operands, f32 accum) --
    x = x_ref[...]
    h = jnp.dot(x.astype(jnp.bfloat16), w1_ref[...],
                preferred_element_type=jnp.float32) + b1_ref[...]
    h = jnp.maximum(h, 0.0)
    feats = jnp.dot(h.astype(jnp.bfloat16), w2_ref[...],
                    preferred_element_type=jnp.float32) + b2_ref[...]
    feat_ref[...] = feats                                            # (TB, O) full store

    protos = protos_ref[...]                                         # (K, D) f32
    psq = psq_ref[...]                                               # (1, K), hoisted

    # ---- stack the T token latents along the sublane axis -> ONE wide VQ pass --------
    lat = jnp.concatenate([feats[:, t * D:(t + 1) * D] for t in range(T)], axis=0)

    # squared distances via ||x||^2 + ||p||^2 - 2 x.p (single MXU call for all tokens)
    x2 = jnp.sum(lat * lat, axis=1, keepdims=True)                   # (N, 1)
    xp = jax.lax.dot_general(lat.astype(jnp.bfloat16), protos.astype(jnp.bfloat16),
                             (((1,), (1,)), ((), ())),
                             preferred_element_type=jnp.float32)     # (N, K)
    logits = -(x2 + psq - 2.0 * xp)

    # gumbel-softmax (hard); noise is streamed from HBM (wrapper-side jax.random.gumbel)
    y = (logits + g_ref[...]) * (1.0 / GUMBEL_TAU)
    m = jnp.max(y, axis=1, keepdims=True)
    p = jnp.exp(y - m)                                               # reused for `soft`
    denom = jnp.sum(p, axis=1, keepdims=True)
    logprobs = (y - m) - jnp.log(denom)                              # log-softmax
    soft = p / denom                                                 # softmax (no 2nd exp)

    # single-hot argmax: first index achieving the row max (no multi-hot rows on ties)
    col = jax.lax.broadcasted_iota(jnp.int32, (n_rows, K), 1)
    idx = jnp.min(jnp.where(y == m, col, K), axis=1, keepdims=True)
    onehot = (col == idx).astype(jnp.float32)

    # quantization: one-hot "gather" via one tiny f32 matmul (K = D = 16)
    q = jnp.dot(onehot, protos, preferred_element_type=jnp.float32)  # (N, D)

    # un-stack tokens back to (TB, T*D) and issue ONE unmasked full-width store
    out_ref[...] = jnp.concatenate([q[t * TB:(t + 1) * TB, :] for t in range(T)], axis=1)

    # per-tile partial statistics (finalized in the wrapper -> batch axis stays parallel)
    ssum_ref[...] = jnp.sum(soft, axis=0, keepdims=True)             # (1, K)
    lsum_ref[...] = jnp.sum(logprobs, axis=0, keepdims=True)         # (1, K)
    sse_ref[...] = jnp.sum((q - lat) ** 2, keepdims=True)            # (1, 1)


def _pick_batch_tile(b, per_row_bytes, budget_bytes):
    """Largest batch tile whose double-buffered streams fit the VMEM budget."""
    cap = max(8, budget_bytes // max(1, 2 * per_row_bytes))          # x2: double buffer
    if b <= cap:
        return b               # block == full batch dim is always layout-legal
    for tb in (4096, 2048, 1024, 512, 256, 128, 64, 32, 16, 8):
        if tb <= cap and b % tb == 0:
            return tb
    return b                   # non-divisible batch: fall back to a single tile


def vqvibc_forward(x, params, num_simultaneous_tokens, seed):
    """Fused VQVIBC forward. Returns (output, features, total_loss)."""
    B = x.shape[0]
    w1, b1 = params["w1"], params["b1"]
    w2, b2 = params["w2"], params["b2"]
    protos = params["protos"]
    F = w1.shape[0]
    Hd = w1.shape[1]
    O = w2.shape[1]
    K, D = protos.shape
    T = num_simultaneous_tokens
    assert O == T * D
    n_total = B * T

    # glue: NCHW flatten (row-major, identical to torch.flatten); keep x's native dtype
    x_flat = jnp.reshape(x, (B, F))
    # prototype squared norms, hoisted out of the kernel (constant across all tiles)
    psq = jnp.sum(protos * protos, axis=1)[None, :]                  # (1, K)

    # ---- batch tile sized against the VMEM budget -------------------------------------
    resident = 2 * (F * Hd * 2 + Hd * O * 2 + (Hd + O + K * D + K) * 4)   # weights etc.
    per_row = (F * x_flat.dtype.itemsize      # x tile row
               + 2 * O * 4                    # features + quantized output rows
               + T * K * 4                    # gumbel noise rows
               + Hd * 4                       # hidden activation row
               + T * (4 * K + 2 * D) * 4)     # y/p/soft/logprobs + lat/q intermediates
    budget = VMEM_LIMIT_BYTES - resident - (4 << 20)
    TB = _pick_batch_tile(B, per_row, budget)
    if B % TB != 0:
        TB = B
    nsteps = B // TB
    NR = T * TB

    # Gumbel noise generated once in the wrapper (fixes prng_seed lowering failure);
    # deterministic from `seed`, iid per (tile, row, proto).
    gumbel = jax.random.gumbel(jax.random.PRNGKey(seed), (nsteps, NR, K), jnp.float32)

    kernel = functools.partial(_fused_kernel, num_tokens=T, proto_dim=D)

    out, feats, ssum_p, lsum_p, sse_p = pl.pallas_call(
        kernel,
        grid=(nsteps,),
        in_specs=[
            pl.BlockSpec((TB, F), lambda i: (i, 0)),            # x tile (pipelined)
            pl.BlockSpec((F, Hd), lambda i: (0, 0)),            # w1 (resident, bf16)
            pl.BlockSpec((1, Hd), lambda i: (0, 0)),            # b1
            pl.BlockSpec((Hd, O), lambda i: (0, 0)),            # w2 (resident, bf16)
            pl.BlockSpec((1, O), lambda i: (0, 0)),             # b2
            pl.BlockSpec((K, D), lambda i: (0, 0)),             # prototypes (f32)
            pl.BlockSpec((1, K), lambda i: (0, 0)),             # |p|^2
            pl.BlockSpec((None, NR, K), lambda i: (i, 0, 0)),   # gumbel noise tile
        ],
        out_specs=(
            pl.BlockSpec((TB, O), lambda i: (i, 0)),            # quantized output
            pl.BlockSpec((TB, O), lambda i: (i, 0)),            # features
            pl.BlockSpec((None, 1, K), lambda i: (i, 0, 0)),    # partial sum(soft)
            pl.BlockSpec((None, 1, K), lambda i: (i, 0, 0)),    # partial sum(logprobs)
            pl.BlockSpec((None, 1, 1), lambda i: (i, 0, 0)),    # partial SSE
        ),
        out_shape=(
            jax.ShapeDtypeStruct((B, O), jnp.float32),
            jax.ShapeDtypeStruct((B, O), jnp.float32),
            jax.ShapeDtypeStruct((nsteps, 1, K), jnp.float32),
            jax.ShapeDtypeStruct((nsteps, 1, K), jnp.float32),
            jax.ShapeDtypeStruct((nsteps, 1, 1), jnp.float32),
        ),
        compiler_params=pltpu.CompilerParams(
            # tiles are fully independent now (stats finalized in the wrapper), so the
            # batch axis can shard across v7x's 2 TensorCores
            dimension_semantics=("parallel",),
            vmem_limit_bytes=VMEM_LIMIT_BYTES),
    )(x_flat, w1.astype(jnp.bfloat16), b1, w2.astype(jnp.bfloat16), b2,
      protos, psq, gumbel)

    # ---- tiny batch-global finalize in plain JAX ---------------------------------------
    n = jnp.float32(n_total)
    ssum = jnp.sum(ssum_p, axis=(0, 1))                              # (K,)
    lsum = jnp.sum(lsum_p, axis=(0, 1))                              # (K,)
    sse = jnp.sum(sse_p)                                             # scalar
    s_mean = ssum / n + EPS                                          # mean(soft) + eps
    prior = s_mean / jnp.sum(s_mean)                                 # normalized prior
    plogp = jnp.sum(prior * jnp.log(prior))
    complexity = plogp - jnp.sum(prior * lsum) / n                   # KLDiv 'batchmean'
    ent = -plogp
    mse = sse / (n * D)
    # embedding_loss + 0.25 * commitment_loss == 1.25 * MSE (forward value)
    total_loss = KL_WEIGHT * complexity + ENTROPY_WEIGHT * ent + 1.25 * mse
    return out, feats, total_loss


def init_params(key, in_features, hidden, output_dim, num_protos, proto_latent_dim):
    k1, k2, k3, k4, k5 = jax.random.split(key, 5)
    s1 = 1.0 / jnp.sqrt(in_features)
    s2 = 1.0 / jnp.sqrt(hidden)
    return {
        "w1": jax.random.uniform(k1, (in_features, hidden), minval=-s1, maxval=s1,
                                 dtype=jnp.float32),
        "b1": jax.random.uniform(k2, (1, hidden), minval=-s1, maxval=s1,
                                 dtype=jnp.float32),
        "w2": jax.random.uniform(k3, (hidden, output_dim), minval=-s2, maxval=s2,
                                 dtype=jnp.float32),
        "b2": jax.random.uniform(k4, (1, output_dim), minval=-s2, maxval=s2,
                                 dtype=jnp.float32),
        # nn.Parameter(...).uniform_(-1, 1)
        "protos": jax.random.uniform(k5, (num_protos, proto_latent_dim),
                                     minval=-1.0, maxval=1.0, dtype=jnp.float32),
    }


if __name__ == "__main__":
    key = jax.random.PRNGKey(0)
    k_x, k_p = jax.random.split(key, 2)

    # small shapes consistent with the module
    B, C, H, W = 2, 4, 16, 16
    output_dim = 32
    num_protos = 16
    num_simultaneous_tokens = 2
    proto_latent_dim = output_dim // num_simultaneous_tokens
    hidden = 64

    x = jax.random.normal(k_x, (B, C, H, W), dtype=jnp.float32)
    params = init_params(k_p, C * H * W, hidden, output_dim, num_protos,
                         proto_latent_dim)

    output, features, total_loss = vqvibc_forward(
        x, params, num_simultaneous_tokens, seed=0)
    jax.block_until_ready((output, features, total_loss))

    assert output.shape == (B, output_dim), output.shape
    assert features.shape == (B, output_dim), features.shape
    assert bool(jnp.isfinite(total_loss))
    assert bool(jnp.all(jnp.isfinite(output)))
    assert bool(jnp.all(jnp.isfinite(features)))

    print("KERNEL_OK")
</pallas_src>

<mosaic_0001>
module attributes {stable_mosaic.version = 11 : i64} {
  func.func @_fused_kernel(%arg0: i32, %arg1: memref<2x1024xf32, #tpu.memory_space<vmem>>, %arg2: memref<1024x64xbf16, #tpu.memory_space<vmem>>, %arg3: memref<1x64xf32, #tpu.memory_space<vmem>>, %arg4: memref<64x32xbf16, #tpu.memory_space<vmem>>, %arg5: memref<1x32xf32, #tpu.memory_space<vmem>>, %arg6: memref<16x16xf32, #tpu.memory_space<vmem>>, %arg7: memref<1x16xf32, #tpu.memory_space<vmem>>, %arg8: memref<1x4x16xf32, #tpu.memory_space<vmem>>, %arg9: memref<2x32xf32, #tpu.memory_space<vmem>>, %arg10: memref<2x32xf32, #tpu.memory_space<vmem>>, %arg11: memref<1x1x16xf32, #tpu.memory_space<vmem>>, %arg12: memref<1x1x16xf32, #tpu.memory_space<vmem>>, %arg13: memref<1x1x1xf32, #tpu.memory_space<vmem>>) attributes {dimension_semantics = [#tpu.dimension_semantics<parallel>], iteration_bounds = array<i64: 1>, scalar_prefetch = 0 : i64, scratch_operands = 0 : i64, tpu.core_type = #tpu.core_type<tc>, window_params = [{transform_indices = @transform_0, window_bounds = array<i64: 2, 1024>}, {pipeline_mode = #tpu.pipeline_mode<synchronous>, transform_indices = @transform_1, window_bounds = array<i64: 1024, 64>}, {pipeline_mode = #tpu.pipeline_mode<synchronous>, transform_indices = @transform_2, window_bounds = array<i64: 1, 64>}, {pipeline_mode = #tpu.pipeline_mode<synchronous>, transform_indices = @transform_3, window_bounds = array<i64: 64, 32>}, {pipeline_mode = #tpu.pipeline_mode<synchronous>, transform_indices = @transform_4, window_bounds = array<i64: 1, 32>}, {pipeline_mode = #tpu.pipeline_mode<synchronous>, transform_indices = @transform_5, window_bounds = array<i64: 16, 16>}, {pipeline_mode = #tpu.pipeline_mode<synchronous>, transform_indices = @transform_6, window_bounds = array<i64: 1, 16>}, {transform_indices = @transform_7, window_bounds = array<i64: 1, 4, 16>}, {transform_indices = @transform_8, window_bounds = array<i64: 2, 32>}, {transform_indices = @transform_9, window_bounds = array<i64: 2, 32>}, {transform_indices = @transform_10, window_bounds = array<i64: 1, 1, 16>}, {transform_indices = @transform_11, window_bounds = array<i64: 1, 1, 16>}, {transform_indices = @transform_12, window_bounds = array<i64: 1, 1, 1>}]} {
    %c0 = arith.constant 0 : index
    %c0_0 = arith.constant 0 : index
    %0 = vector.load %arg1[%c0, %c0_0] : memref<2x1024xf32, #tpu.memory_space<vmem>>, vector<2x1024xf32>
    %1 = arith.truncf %0 : vector<2x1024xf32> to vector<2x1024xbf16>
    %c0_1 = arith.constant 0 : index
    %c0_2 = arith.constant 0 : index
    %2 = vector.load %arg2[%c0_1, %c0_2] : memref<1024x64xbf16, #tpu.memory_space<vmem>>, vector<1024x64xbf16>
    %cst = arith.constant dense<0.000000e+00> : vector<2x64xf32>
    %3 = tpu.matmul %1, %2, %cst {dimension_numbers = #tpu.dot_dimension_numbers<[1], [0], [0], [1], [0, 0, 1, 1], [], []>} : vector<2x1024xbf16>, vector<1024x64xbf16>, vector<2x64xf32> -> vector<2x64xf32>
    %c0_3 = arith.constant 0 : index
    %c0_4 = arith.constant 0 : index
    %4 = vector.load %arg3[%c0_3, %c0_4] : memref<1x64xf32, #tpu.memory_space<vmem>>, vector<1x64xf32>
    %5 = vector.broadcast %4 : vector<1x64xf32> to vector<2x64xf32>
    %6 = arith.addf %3, %5 : vector<2x64xf32>
    %cst_5 = arith.constant 0.000000e+00 : f32
    %7 = vector.broadcast %cst_5 : f32 to vector<2x64xf32>
    %8 = arith.maximumf %6, %7 : vector<2x64xf32>
    %9 = arith.truncf %8 : vector<2x64xf32> to vector<2x64xbf16>
    %c0_6 = arith.constant 0 : index
    %c0_7 = arith.constant 0 : index
    %10 = vector.load %arg4[%c0_6, %c0_7] : memref<64x32xbf16, #tpu.memory_space<vmem>>, vector<64x32xbf16>
    %cst_8 = arith.constant dense<0.000000e+00> : vector<2x32xf32>
    %11 = tpu.matmul %9, %10, %cst_8 {dimension_numbers = #tpu.dot_dimension_numbers<[1], [0], [0], [1], [0, 0, 1, 1], [], []>} : vector<2x64xbf16>, vector<64x32xbf16>, vector<2x32xf32> -> vector<2x32xf32>
    %c0_9 = arith.constant 0 : index
    %c0_10 = arith.constant 0 : index
    %12 = vector.load %arg5[%c0_9, %c0_10] : memref<1x32xf32, #tpu.memory_space<vmem>>, vector<1x32xf32>
    %13 = vector.broadcast %12 : vector<1x32xf32> to vector<2x32xf32>
    %14 = arith.addf %11, %13 : vector<2x32xf32>
    %c0_11 = arith.constant 0 : index
    %c0_12 = arith.constant 0 : index
    %15 = vector.load %arg10[%c0_11, %c0_12] : memref<2x32xf32, #tpu.memory_space<vmem>>, vector<2x32xf32>
    tpu.vector_store %arg10[%c0_11, %c0_12], %14 {strides = array<i32>} : memref<2x32xf32, #tpu.memory_space<vmem>>, vector<2x32xf32>,
    %c0_13 = arith.constant 0 : index
    %c0_14 = arith.constant 0 : index
    %16 = vector.load %arg6[%c0_13, %c0_14] : memref<16x16xf32, #tpu.memory_space<vmem>>, vector<16x16xf32>
    %c0_15 = arith.constant 0 : index
    %c0_16 = arith.constant 0 : index
    %17 = vector.load %arg7[%c0_15, %c0_16] : memref<1x16xf32, #tpu.memory_space<vmem>>, vector<1x16xf32>
    %18 = vector.extract_strided_slice %14 {offsets = [0, 0], sizes = [2, 16], strides = [1, 1]} : vector<2x32xf32> to vector<2x16xf32>
    %19 = vector.extract_strided_slice %14 {offsets = [0, 16], sizes = [2, 16], strides = [1, 1]} : vector<2x32xf32> to vector<2x16xf32>
    %20 = tpu.concatenate %18, %19 in 0 : vector<2x16xf32>, vector<2x16xf32> -> vector<4x16xf32>
    %21 = arith.mulf %20, %20 : vector<4x16xf32>
    %cst_17 = arith.constant dense<0.000000e+00> : vector<4xf32>
    %22 = vector.multi_reduction <add>, %21, %cst_17 [1] : vector<4x16xf32> to vector<4xf32>
    %23 = vector.shape_cast %22 : vector<4xf32> to vector<4x1xf32>
    %24 = arith.truncf %20 : vector<4x16xf32> to vector<4x16xbf16>
    %25 = arith.truncf %16 : vector<16x16xf32> to vector<16x16xbf16>
    %cst_18 = arith.constant dense<0.000000e+00> : vector<4x16xf32>
    %26 = tpu.matmul %24, %25, %cst_18 {dimension_numbers = #tpu.dot_dimension_numbers<[1], [1], [0], [0], [0, 0, 1, 0], [], []>} : vector<4x16xbf16>, vector<16x16xbf16>, vector<4x16xf32> -> vector<4x16xf32>
    %27 = vector.broadcast %23 : vector<4x1xf32> to vector<4x16xf32>
    %28 = vector.broadcast %17 : vector<1x16xf32> to vector<4x16xf32>
    %29 = arith.addf %27, %28 : vector<4x16xf32>
    %cst_19 = arith.constant 2.000000e+00 : f32
    %30 = vector.broadcast %cst_19 : f32 to vector<4x16xf32>
    %31 = arith.mulf %30, %26 : vector<4x16xf32>
    %32 = arith.subf %29, %31 : vector<4x16xf32>
    %cst_20 = arith.constant 0.000000e+00 : f32
    %33 = vector.broadcast %cst_20 : f32 to vector<4x16xf32>
    %34 = arith.subf %33, %32 : vector<4x16xf32>
    %c0_21 = arith.constant 0 : index
    %c0_22 = arith.constant 0 : index
    %c0_23 = arith.constant 0 : index
    %35 = vector.load %arg8[%c0_21, %c0_22, %c0_23] : memref<1x4x16xf32, #tpu.memory_space<vmem>>, vector<1x4x16xf32>
    %36 = vector.shape_cast %35 : vector<1x4x16xf32> to vector<4x16xf32>
    %37 = arith.addf %34, %36 : vector<4x16xf32>
    %cst_24 = arith.constant 1.000000e+00 : f32
    %38 = vector.broadcast %cst_24 : f32 to vector<4x16xf32>
    %39 = arith.mulf %37, %38 : vector<4x16xf32>
    %cst_25 = arith.constant dense<0xFF800000> : vector<4xf32>
    %40 = vector.multi_reduction <maximumf>, %39, %cst_25 [1] : vector<4x16xf32> to vector<4xf32>
    %41 = vector.shape_cast %40 : vector<4xf32> to vector<4x1xf32>
    %42 = vector.broadcast %41 : vector<4x1xf32> to vector<4x16xf32>
    %43 = arith.subf %39, %42 : vector<4x16xf32>
    %44 = math.exp %43 : vector<4x16xf32>
    %cst_26 = arith.constant dense<0.000000e+00> : vector<4xf32>
    %45 = vector.multi_reduction <add>, %44, %cst_26 [1] : vector<4x16xf32> to vector<4xf32>
    %46 = vector.shape_cast %45 : vector<4xf32> to vector<4x1xf32>
    %47 = vector.broadcast %41 : vector<4x1xf32> to vector<4x16xf32>
    %48 = arith.subf %39, %47 : vector<4x16xf32>
    %49 = math.log %46 : vector<4x1xf32>
    %50 = vector.broadcast %49 : vector<4x1xf32> to vector<4x16xf32>
    %51 = arith.subf %48, %50 : vector<4x16xf32>
    %52 = vector.broadcast %46 : vector<4x1xf32> to vector<4x16xf32>
    %53 = arith.divf %44, %52 : vector<4x16xf32>
    %54 = tpu.iota {dimensions = array<i32: 1>} : vector<4x16xi32>
    %55 = vector.broadcast %41 : vector<4x1xf32> to vector<4x16xf32>
    %56 = arith.cmpf oeq, %39, %55 : vector<4x16xf32>
    %c16_i32 = arith.constant 16 : i32
    %57 = vector.broadcast %c16_i32 : i32 to vector<4x16xi32>
    %58 = arith.select %56, %54, %57 : vector<4x16xi1>, vector<4x16xi32>
    %cst_27 = arith.constant dense<2147483647> : vector<4xi32>
    %59 = vector.multi_reduction <minsi>, %58, %cst_27 [1] : vector<4x16xi32> to vector<4xi32>
    %60 = vector.shape_cast %59 : vector<4xi32> to vector<4x1xi32>
    %61 = vector.broadcast %60 : vector<4x1xi32> to vector<4x16xi32>
    %62 = arith.cmpi eq, %54, %61 : vector<4x16xi32>
    %63 = arith.extui %62 : vector<4x16xi1> to vector<4x16xi32>
    %64 = arith.sitofp %63 : vector<4x16xi32> to vector<4x16xf32>
    %cst_28 = arith.constant dense<0.000000e+00> : vector<4x16xf32>
    %65 = tpu.matmul %64, %16, %cst_28 {dimension_numbers = #tpu.dot_dimension_numbers<[1], [0], [0], [1], [0, 0, 1, 1], [], []>} : vector<4x16xf32>, vector<16x16xf32>, vector<4x16xf32> -> vector<4x16xf32>
    %66 = vector.extract_strided_slice %65 {offsets = [0, 0], sizes = [2, 16], strides = [1, 1]} : vector<4x16xf32> to vector<2x16xf32>
    %67 = vector.extract_strided_slice %65 {offsets = [2, 0], sizes = [2, 16], strides = [1, 1]} : vector<4x16xf32> to vector<2x16xf32>
    %68 = tpu.concatenate %66, %67 in 1 : vector<2x16xf32>, vector<2x16xf32> -> vector<2x32xf32>
    %c0_29 = arith.constant 0 : index
    %c0_30 = arith.constant 0 : index
    %69 = vector.load %arg9[%c0_29, %c0_30] : memref<2x32xf32, #tpu.memory_space<vmem>>, vector<2x32xf32>
    tpu.vector_store %arg9[%c0_29, %c0_30], %68 {strides = array<i32>} : memref<2x32xf32, #tpu.memory_space<vmem>>, vector<2x32xf32>,
    %cst_31 = arith.constant dense<0.000000e+00> : vector<16xf32>
    %70 = vector.multi_reduction <add>, %53, %cst_31 [0] : vector<4x16xf32> to vector<16xf32>
    %71 = vector.shape_cast %70 : vector<16xf32> to vector<1x16xf32>
    %c0_32 = arith.constant 0 : index
    %c0_33 = arith.constant 0 : index
    %c0_34 = arith.constant 0 : index
    %72 = vector.load %arg11[%c0_32, %c0_33, %c0_34] : memref<1x1x16xf32, #tpu.memory_space<vmem>>, vector<1x1x16xf32>
    %73 = vector.shape_cast %72 : vector<1x1x16xf32> to vector<1x16xf32>
    %74 = vector.shape_cast %71 : vector<1x16xf32> to vector<1x1x16xf32>
    tpu.vector_store %arg11[%c0_32, %c0_33, %c0_34], %74 {strides = array<i32>} : memref<1x1x16xf32, #tpu.memory_space<vmem>>, vector<1x1x16xf32>,
    %cst_35 = arith.constant dense<0.000000e+00> : vector<16xf32>
    %75 = vector.multi_reduction <add>, %51, %cst_35 [0] : vector<4x16xf32> to vector<16xf32>
    %76 = vector.shape_cast %75 : vector<16xf32> to vector<1x16xf32>
    %c0_36 = arith.constant 0 : index
    %c0_37 = arith.constant 0 : index
    %c0_38 = arith.constant 0 : index
    %77 = vector.load %arg12[%c0_36, %c0_37, %c0_38] : memref<1x1x16xf32, #tpu.memory_space<vmem>>, vector<1x1x16xf32>
    %78 = vector.shape_cast %77 : vector<1x1x16xf32> to vector<1x16xf32>
    %79 = vector.shape_cast %76 : vector<1x16xf32> to vector<1x1x16xf32>
    tpu.vector_store %arg12[%c0_36, %c0_37, %c0_38], %79 {strides = array<i32>} : memref<1x1x16xf32, #tpu.memory_space<vmem>>, vector<1x1x16xf32>,
    %80 = arith.subf %65, %20 : vector<4x16xf32>
    %81 = arith.mulf %80, %80 : vector<4x16xf32>
    %82 = vector.shape_cast %81 : vector<4x16xf32> to vector<1x4x16xf32>
    %cst_39 = arith.constant dense<0.000000e+00> : vector<1xf32>
    %83 = vector.multi_reduction <add>, %82, %cst_39 [1, 2] : vector<1x4x16xf32> to vector<1xf32>
    %84 = vector.shape_cast %83 : vector<1xf32> to vector<1x1x1xf32>
    %85 = vector.extract %84[0, 0, 0] : f32 from vector<1x1x1xf32>
    %86 = vector.broadcast %85 : f32 to vector<1x1xf32>
    %c0_40 = arith.constant 0 : index
    %c0_41 = arith.constant 0 : index
    %c0_42 = arith.constant 0 : index
    %87 = vector.load %arg13[%c0_40, %c0_41, %c0_42] : memref<1x1x1xf32, #tpu.memory_space<vmem>>, vector<1x1x1xf32>
    %88 = vector.shape_cast %87 : vector<1x1x1xf32> to vector<1x1xf32>
    %89 = vector.shape_cast %86 : vector<1x1xf32> to vector<1x1x1xf32>
    tpu.vector_store %arg13[%c0_40, %c0_41, %c0_42], %89 {strides = array<i32>} : memref<1x1x1xf32, #tpu.memory_space<vmem>>, vector<1x1x1xf32>,
    return
  }
  func.func @transform_0(%arg0: i32) -> (i32, i32) {
    %c0_i32 = arith.constant 0 : i32
    %c0_i32_0 = arith.constant 0 : i32
    return %arg0, %c0_i32 : i32, i32
  }
  func.func @transform_1(%arg0: i32) -> (i32, i32) {
    %c0_i32 = arith.constant 0 : i32
    %c0_i32_0 = arith.constant 0 : i32
    %c0_i32_1 = arith.constant 0 : i32
    return %c0_i32, %c0_i32_0 : i32, i32
  }
  func.func @transform_2(%arg0: i32) -> (i32, i32) {
    %c0_i32 = arith.constant 0 : i32
    %c0_i32_0 = arith.constant 0 : i32
    %c0_i32_1 = arith.constant 0 : i32
    return %c0_i32, %c0_i32_0 : i32, i32
  }
  func.func @transform_3(%arg0: i32) -> (i32, i32) {
    %c0_i32 = arith.constant 0 : i32
    %c0_i32_0 = arith.constant 0 : i32
    %c0_i32_1 = arith.constant 0 : i32
    return %c0_i32, %c0_i32_0 : i32, i32
  }
  func.func @transform_4(%arg0: i32) -> (i32, i32) {
    %c0_i32 = arith.constant 0 : i32
    %c0_i32_0 = arith.constant 0 : i32
    %c0_i32_1 = arith.constant 0 : i32
    return %c0_i32, %c0_i32_0 : i32, i32
  }
  func.func @transform_5(%arg0: i32) -> (i32, i32) {
    %c0_i32 = arith.constant 0 : i32
    %c0_i32_0 = arith.constant 0 : i32
    %c0_i32_1 = arith.constant 0 : i32
    return %c0_i32, %c0_i32_0 : i32, i32
  }
  func.func @transform_6(%arg0: i32) -> (i32, i32) {
    %c0_i32 = arith.constant 0 : i32
    %c0_i32_0 = arith.constant 0 : i32
    %c0_i32_1 = arith.constant 0 : i32
    return %c0_i32, %c0_i32_0 : i32, i32
  }
  func.func @transform_7(%arg0: i32) -> (i32, i32, i32) {
    %c0_i32 = arith.constant 0 : i32
    %c0_i32_0 = arith.constant 0 : i32
    %c0_i32_1 = arith.constant 0 : i32
    return %arg0, %c0_i32, %c0_i32_0 : i32, i32, i32
  }
  func.func @transform_8(%arg0: i32) -> (i32, i32) {
    %c0_i32 = arith.constant 0 : i32
    %c0_i32_0 = arith.constant 0 : i32
    return %arg0, %c0_i32 : i32, i32
  }
  func.func @transform_9(%arg0: i32) -> (i32, i32) {
    %c0_i32 = arith.constant 0 : i32
    %c0_i32_0 = arith.constant 0 : i32
    return %arg0, %c0_i32 : i32, i32
  }
  func.func @transform_10(%arg0: i32) -> (i32, i32, i32) {
    %c0_i32 = arith.constant 0 : i32
    %c0_i32_0 = arith.constant 0 : i32
    %c0_i32_1 = arith.constant 0 : i32
    return %arg0, %c0_i32, %c0_i32_0 : i32, i32, i32
  }
  func.func @transform_11(%arg0: i32) -> (i32, i32, i32) {
    %c0_i32 = arith.constant 0 : i32
    %c0_i32_0 = arith.constant 0 : i32
    %c0_i32_1 = arith.constant 0 : i32
    return %arg0, %c0_i32, %c0_i32_0 : i32, i32, i32
  }
  func.func @transform_12(%arg0: i32) -> (i32, i32, i32) {
    %c0_i32 = arith.constant 0 : i32
    %c0_i32_0 = arith.constant 0 : i32
    %c0_i32_1 = arith.constant 0 : i32
    return %arg0, %c0_i32, %c0_i32_0 : i32, i32, i32
  }
}

</mosaic_0001>

<llo_original>
// kernel: tpu_custom_call.1
$region0: #{tpu_custom_call.1}
  #allocation0 [shape = 'u32[]', space=smem, size = 0x4, offset = 0x4, fixed_abs, tag = 'smem constant byte address 0x4 - core index']
  #allocation1 [shape = 'u32[144,128]{1,0:T(1,128)}', space=vmem, size = 0x12000, scoped, tag = 'internal scratch']
  %s0 = inlined_call_operand.vmem [shape: f32[2,1024], index: 0, kind: input, shape index: {}]
  %s1 = inlined_call_operand.vmem [shape: bf16[1024,64], index: 1, kind: input, shape index: {}]
  %s2 = inlined_call_operand.vmem [shape: f32[1,64], index: 2, kind: input, shape index: {}]
  %s3 = inlined_call_operand.vmem [shape: bf16[64,32], index: 3, kind: input, shape index: {}]
  %s4 = inlined_call_operand.vmem [shape: f32[1,32], index: 4, kind: input, shape index: {}]
  %s5 = inlined_call_operand.vmem [shape: f32[16,16], index: 5, kind: input, shape index: {}]
  %s6 = inlined_call_operand.vmem [shape: f32[1,16], index: 6, kind: input, shape index: {}]
  %s7 = inlined_call_operand.vmem [shape: f32[1,4,16], index: 7, kind: input, shape index: {}]
  %s8 = inlined_call_operand.hbm [shape: f32[2,32], index: 8, kind: output, shape index: {0}]
  %s9 = inlined_call_operand.hbm [shape: f32[2,32], index: 9, kind: output, shape index: {1}]
  %s10 = inlined_call_operand.hbm [shape: f32[1,1,16], index: 10, kind: output, shape index: {2}]
  %s11 = inlined_call_operand.hbm [shape: f32[1,1,16], index: 11, kind: output, shape index: {3}]
  %s12 = inlined_call_operand.hbm [shape: f32[1,1,1], index: 12, kind: output, shape index: {4}]
  %13 = xla_tuple %s8, %s9, %s10, %s11, %s12
  %s14 = sld [smem:[#allocation0]]
  $region74: #{tpu_custom_call.1} parent=0
    _
  %s16 = ssub.s32 1, %s14
  %s17 = scalar_select 0, %s16, %s14
  $region1: #{tpu_custom_call.1} parent=0
    #allocation2 [shape = 'u8[1024]{0}', space=vmem, size = 0x400, scoped, tag = 'output window, operand 0, single buffered']
    #allocation3 [shape = 's32[1]{0}', space=sflag, size = 0x4, scoped, tag = 'scoped memory for tpu_custom_call.1']
    #allocation4 [shape = 'u8[1024]{0}', space=vmem, size = 0x400, scoped, tag = 'output window, operand 1, single buffered']
    #allocation5 [shape = 's32[1]{0}', space=sflag, size = 0x4, scoped, tag = 'scoped memory for tpu_custom_call.1']
    #allocation6 [shape = 'u8[512]{0}', space=vmem, size = 0x400, scoped, tag = 'output window, operand 2, single buffered']
    #allocation7 [shape = 'u8[512]{0}', space=vmem, size = 0x400, scoped, tag = 'output window, operand 3, single buffered']
    #allocation8 [shape = 's32[1]{0}', space=sflag, size = 0x4, scoped, tag = 'scoped memory for tpu_custom_call.1']
    #allocation9 [shape = 'u8[512]{0}', space=vmem, size = 0x400, scoped, tag = 'output window, operand 4, single buffered']
    %18 = vsyncpa [#allocation3], 0
    %19 = vsyncpa [#allocation5], 0
    %20 = vsyncpa [#allocation8], 0
    // Predicated region
    $region2: #{tpu_custom_call.1} parent=1 // pred_check
      _
    $region3: #{tpu_custom_call.1} parent=1 // pred_check_branch
      %22 = sbr.rel (0) target = $region5
    $region4: #{tpu_custom_call.1} parent=1 // pred_region
      _
    $region5: #{tpu_custom_call.1} parent=1 // pred_fallthru
      _
    // Predicated region
    $region6: #{tpu_custom_call.1} parent=1 // pred_check
      _
    $region7: #{tpu_custom_call.1} parent=1 // pred_check_branch
      %24 = sbr.rel (0) target = $region9
    $region8: #{tpu_custom_call.1} parent=1 // pred_region
      _
    $region9: #{tpu_custom_call.1} parent=1 // pred_fallthru
      _
    // Predicated region
    $region10: #{tpu_custom_call.1} parent=1 // pred_check
      _
    $region11: #{tpu_custom_call.1} parent=1 // pred_check_branch
      %26 = sbr.rel (0) target = $region13
    $region12: #{tpu_custom_call.1} parent=1 // pred_region
      _
    $region13: #{tpu_custom_call.1} parent=1 // pred_fallthru
      _
    // Predicated region
    $region14: #{tpu_custom_call.1} parent=1 // pred_check
      _
    $region15: #{tpu_custom_call.1} parent=1 // pred_check_branch
      %28 = sbr.rel (0) target = $region17
    $region16: #{tpu_custom_call.1} parent=1 // pred_region
      _
    $region17: #{tpu_custom_call.1} parent=1 // pred_fallthru
      _
    // Predicated region
    $region18: #{tpu_custom_call.1} parent=1 // pred_check
      _
    $region19: #{tpu_custom_call.1} parent=1 // pred_check_branch
      %30 = sbr.rel (0) target = $region21
    $region20: #{tpu_custom_call.1} parent=1 // pred_region
      _
    $region21: #{tpu_custom_call.1} parent=1 // pred_fallthru
      _
    // Predicated region
    $region22: #{tpu_custom_call.1} parent=1 // pred_check
      _
    $region23: #{tpu_custom_call.1} parent=1 // pred_check_branch
      %32 = sbr.rel (0) target = $region25
    $region24: #{tpu_custom_call.1} parent=1 // pred_region
      _
    $region25: #{tpu_custom_call.1} parent=1 // pred_fallthru
      _
    // Predicated region
    $region26: #{tpu_custom_call.1} parent=1 // pred_check
      _
    $region27: #{tpu_custom_call.1} parent=1 // pred_check_branch
      %34 = sbr.rel (0) target = $region29
    $region28: #{tpu_custom_call.1} parent=1 // pred_region
      _
    $region29: #{tpu_custom_call.1} parent=1 // pred_fallthru
      _
    // Predicated region
    $region30: #{tpu_custom_call.1} parent=1 // pred_check
      _
    $region31: #{tpu_custom_call.1} parent=1 // pred_check_branch
      %36 = sbr.rel (0) target = $region33
    $region32: #{tpu_custom_call.1} parent=1 // pred_region
      _
    $region33: #{tpu_custom_call.1} parent=1 // pred_fallthru
      _
    %v38 = vld [vmem:[%s0] sm:$0xff]
    %v39 = vld [vmem:[%s0 + $0x8] sm:$0xff]
    %v42 = vcombine.high %v38, %v38
    %v44 = vunpack.c.l.s4 1983009808
    %v45 = vunpack.c.0.s8 %v44
    %v46 = vlaneseq
    %v47 = vshrl.u32 %v46, 7
    %v48 = vsub.s32 %v45, %v47
    %v49 = vrot.slane %v38, %v48
    %v51 = vunpack.c.l.s4 1983009808
    %v52 = vunpack.c.0.s8 %v51
    %v53 = vlaneseq
    %v54 = vshrl.u32 %v53, 7
    %v55 = vsub.s32 %v52, %v54
    %v56 = vrot.slane %v42, %v55
    %v57 = vcombine.high %v49, %v49
    %v58 = vcombine.high %v56, %v56
    %v59 = vcombine.high %v39, %v39
    %v61 = vunpack.c.l.s4 1983009808
    %v62 = vunpack.c.0.s8 %v61
    %v63 = vlaneseq
    %v64 = vshrl.u32 %v63, 7
    %v65 = vsub.s32 %v62, %v64
    %v66 = vrot.slane %v39, %v65
    %v68 = vunpack.c.l.s4 1983009808
    %v69 = vunpack.c.0.s8 %v68
    %v70 = vlaneseq
    %v71 = vshrl.u32 %v70, 7
    %v72 = vsub.s32 %v69, %v71
    %v73 = vrot.slane %v59, %v72
    %v74 = vcombine.high %v66, %v66
    %v75 = vcombine.high %v73, %v73
    %v84 = vpack.c.bf16 %v49, %v49
    %v85 = vpack.c.bf16 %v57, %v57
    %v86 = vpack.c.bf16 %v56, %v56
    %v87 = vpack.c.bf16 %v58, %v58
    %v88 = vpack.c.bf16 %v66, %v66
    %v89 = vpack.c.bf16 %v74, %v74
    %v90 = vpack.c.bf16 %v73, %v73
    %v91 = vpack.c.bf16 %v75, %v75
    %v92 = vld [vmem:[%s1] sm:$0xf]
    %v93 = vld [vmem:[%s1 + $0x4] sm:$0xf]
    %v94 = vld [vmem:[%s1 + $0x8] sm:$0xf]
    %v95 = vld [vmem:[%s1 + $0xc] sm:$0xf]
    %v96 = vld [vmem:[%s1 + $0x10] sm:$0xf]
    %v97 = vld [vmem:[%s1 + $0x14] sm:$0xf]
    %v98 = vld [vmem:[%s1 + $0x18] sm:$0xf]
    %v99 = vld [vmem:[%s1 + $0x1c] sm:$0xf]
    %v100 = vld [vmem:[%s1 + $0x20] sm:$0xf]
    %v101 = vld [vmem:[%s1 + $0x24] sm:$0xf]
    %v102 = vld [vmem:[%s1 + $0x28] sm:$0xf]
    %v103 = vld [vmem:[%s1 + $0x2c] sm:$0xf]
    %v104 = vld [vmem:[%s1 + $0x30] sm:$0xf]
    %v105 = vld [vmem:[%s1 + $0x34] sm:$0xf]
    %v106 = vld [vmem:[%s1 + $0x38] sm:$0xf]
    %v107 = vld [vmem:[%s1 + $0x3c] sm:$0xf]
    %v108 = vld [vmem:[%s1 + $0x40] sm:$0xf]
    %v109 = vld [vmem:[%s1 + $0x44] sm:$0xf]
    %v110 = vld [vmem:[%s1 + $0x48] sm:$0xf]
    %v111 = vld [vmem:[%s1 + $0x4c] sm:$0xf]
    %v112 = vld [vmem:[%s1 + $0x50] sm:$0xf]
    %v113 = vld [vmem:[%s1 + $0x54] sm:$0xf]
    %v114 = vld [vmem:[%s1 + $0x58] sm:$0xf]
    %v115 = vld [vmem:[%s1 + $0x5c] sm:$0xf]
    %v116 = vld [vmem:[%s1 + $0x60] sm:$0xf]
    %v117 = vld [vmem:[%s1 + $0x64] sm:$0xf]
    %v118 = vld [vmem:[%s1 + $0x68] sm:$0xf]
    %v119 = vld [vmem:[%s1 + $0x6c] sm:$0xf]
    %v120 = vld [vmem:[%s1 + $0x70] sm:$0xf]
    %v121 = vld [vmem:[%s1 + $0x74] sm:$0xf]
    %v122 = vld [vmem:[%s1 + $0x78] sm:$0xf]
    %v123 = vld [vmem:[%s1 + $0x7c] sm:$0xf]
    %v124 = vld [vmem:[%s1 + $0x80] sm:$0xf]
    %v125 = vld [vmem:[%s1 + $0x84] sm:$0xf]
    %v126 = vld [vmem:[%s1 + $0x88] sm:$0xf]
    %v127 = vld [vmem:[%s1 + $0x8c] sm:$0xf]
    %v128 = vld [vmem:[%s1 + $0x90] sm:$0xf]
    %v129 = vld [vmem:[%s1 + $0x94] sm:$0xf]
    %v130 = vld [vmem:[%s1 + $0x98] sm:$0xf]
    %v131 = vld [vmem:[%s1 + $0x9c] sm:$0xf]
    %v132 = vld [vmem:[%s1 + $0xa0] sm:$0xf]
    %v133 = vld [vmem:[%s1 + $0xa4] sm:$0xf]
    %v134 = vld [vmem:[%s1 + $0xa8] sm:$0xf]
    %v135 = vld [vmem:[%s1 + $0xac] sm:$0xf]
    %v136 = vld [vmem:[%s1 + $0xb0] sm:$0xf]
    %v137 = vld [vmem:[%s1 + $0xb4] sm:$0xf]
    %v138 = vld [vmem:[%s1 + $0xb8] sm:$0xf]
    %v139 = vld [vmem:[%s1 + $0xbc] sm:$0xf]
    %v140 = vld [vmem:[%s1 + $0xc0] sm:$0xf]
    %v141 = vld [vmem:[%s1 + $0xc4] sm:$0xf]
    %v142 = vld [vmem:[%s1 + $0xc8] sm:$0xf]
    %v143 = vld [vmem:[%s1 + $0xcc] sm:$0xf]
    %v144 = vld [vmem:[%s1 + $0xd0] sm:$0xf]
    %v145 = vld [vmem:[%s1 + $0xd4] sm:$0xf]
    %v146 = vld [vmem:[%s1 + $0xd8] sm:$0xf]
    %v147 = vld [vmem:[%s1 + $0xdc] sm:$0xf]
    %v148 = vld [vmem:[%s1 + $0xe0] sm:$0xf]
    %v149 = vld [vmem:[%s1 + $0xe4] sm:$0xf]
    %v150 = vld [vmem:[%s1 + $0xe8] sm:$0xf]
    %v151 = vld [vmem:[%s1 + $0xec] sm:$0xf]
    %v152 = vld [vmem:[%s1 + $0xf0] sm:$0xf]
    %v153 = vld [vmem:[%s1 + $0xf4] sm:$0xf]
    %v154 = vld [vmem:[%s1 + $0xf8] sm:$0xf]
    %v155 = vld [vmem:[%s1 + $0xfc] sm:$0xf]
    %v156 = vld [vmem:[%s1 + $0x100] sm:$0xf]
    %v157 = vld [vmem:[%s1 + $0x104] sm:$0xf]
    %v158 = vld [vmem:[%s1 + $0x108] sm:$0xf]
    %v159 = vld [vmem:[%s1 + $0x10c] sm:$0xf]
    %v160 = vld [vmem:[%s1 + $0x110] sm:$0xf]
    %v161 = vld [vmem:[%s1 + $0x114] sm:$0xf]
    %v162 = vld [vmem:[%s1 + $0x118] sm:$0xf]
    %v163 = vld [vmem:[%s1 + $0x11c] sm:$0xf]
    %v164 = vld [vmem:[%s1 + $0x120] sm:$0xf]
    %v165 = vld [vmem:[%s1 + $0x124] sm:$0xf]
    %v166 = vld [vmem:[%s1 + $0x128] sm:$0xf]
    %v167 = vld [vmem:[%s1 + $0x12c] sm:$0xf]
    %v168 = vld [vmem:[%s1 + $0x130] sm:$0xf]
    %v169 = vld [vmem:[%s1 + $0x134] sm:$0xf]
    %v170 = vld [vmem:[%s1 + $0x138] sm:$0xf]
    %v171 = vld [vmem:[%s1 + $0x13c] sm:$0xf]
    %v172 = vld [vmem:[%s1 + $0x140] sm:$0xf]
    %v173 = vld [vmem:[%s1 + $0x144] sm:$0xf]
    %v174 = vld [vmem:[%s1 + $0x148] sm:$0xf]
    %v175 = vld [vmem:[%s1 + $0x14c] sm:$0xf]
    %v176 = vld [vmem:[%s1 + $0x150] sm:$0xf]
    %v177 = vld [vmem:[%s1 + $0x154] sm:$0xf]
    %v178 = vld [vmem:[%s1 + $0x158] sm:$0xf]
    %v179 = vld [vmem:[%s1 + $0x15c] sm:$0xf]
    %v180 = vld [vmem:[%s1 + $0x160] sm:$0xf]
    %v181 = vld [vmem:[%s1 + $0x164] sm:$0xf]
    %v182 = vld [vmem:[%s1 + $0x168] sm:$0xf]
    %v183 = vld [vmem:[%s1 + $0x16c] sm:$0xf]
    %v184 = vld [vmem:[%s1 + $0x170] sm:$0xf]
    %v185 = vld [vmem:[%s1 + $0x174] sm:$0xf]
    %v186 = vld [vmem:[%s1 + $0x178] sm:$0xf]
    %v187 = vld [vmem:[%s1 + $0x17c] sm:$0xf]
    %v188 = vld [vmem:[%s1 + $0x180] sm:$0xf]
    %v189 = vld [vmem:[%s1 + $0x184] sm:$0xf]
    %v190 = vld [vmem:[%s1 + $0x188] sm:$0xf]
    %v191 = vld [vmem:[%s1 + $0x18c] sm:$0xf]
    %v192 = vld [vmem:[%s1 + $0x190] sm:$0xf]
    %v193 = vld [vmem:[%s1 + $0x194] sm:$0xf]
    %v194 = vld [vmem:[%s1 + $0x198] sm:$0xf]
    %v195 = vld [vmem:[%s1 + $0x19c] sm:$0xf]
    %v196 = vld [vmem:[%s1 + $0x1a0] sm:$0xf]
    %v197 = vld [vmem:[%s1 + $0x1a4] sm:$0xf]
    %v198 = vld [vmem:[%s1 + $0x1a8] sm:$0xf]
    %v199 = vld [vmem:[%s1 + $0x1ac] sm:$0xf]
    %v200 = vld [vmem:[%s1 + $0x1b0] sm:$0xf]
    %v201 = vld [vmem:[%s1 + $0x1b4] sm:$0xf]
    %v202 = vld [vmem:[%s1 + $0x1b8] sm:$0xf]
    %v203 = vld [vmem:[%s1 + $0x1bc] sm:$0xf]
    %v204 = vld [vmem:[%s1 + $0x1c0] sm:$0xf]
    %v205 = vld [vmem:[%s1 + $0x1c4] sm:$0xf]
    %v206 = vld [vmem:[%s1 + $0x1c8] sm:$0xf]
    %v207 = vld [vmem:[%s1 + $0x1cc] sm:$0xf]
    %v208 = vld [vmem:[%s1 + $0x1d0] sm:$0xf]
    %v209 = vld [vmem:[%s1 + $0x1d4] sm:$0xf]
    %v210 = vld [vmem:[%s1 + $0x1d8] sm:$0xf]
    %v211 = vld [vmem:[%s1 + $0x1dc] sm:$0xf]
    %v212 = vld [vmem:[%s1 + $0x1e0] sm:$0xf]
    %v213 = vld [vmem:[%s1 + $0x1e4] sm:$0xf]
    %v214 = vld [vmem:[%s1 + $0x1e8] sm:$0xf]
    %v215 = vld [vmem:[%s1 + $0x1ec] sm:$0xf]
    %v216 = vld [vmem:[%s1 + $0x1f0] sm:$0xf]
    %v217 = vld [vmem:[%s1 + $0x1f4] sm:$0xf]
    %v218 = vld [vmem:[%s1 + $0x1f8] sm:$0xf]
    %v219 = vld [vmem:[%s1 + $0x1fc] sm:$0xf]
    %v220 = vld [vmem:[%s2] sm:$0x1]
    %v222 = vlaneseq
    %v223 = vshrl.u32 %v222, 7
    %v224 = vsub.s32 0, %v223
    %v225 = vrot.slane %v220, %v224
    %v355 = vunpack.c.l.b16 %v92
    %v356 = vunpack.c.l.b16 %v93
    %v357 = vunpack.c.l.b16 %v94
    %v358 = vunpack.c.l.b16 %v95
    %v359 = vunpack.c.l.b16 %v96
    %v360 = vunpack.c.l.b16 %v97
    %v361 = vunpack.c.l.b16 %v98
    %v362 = vunpack.c.l.b16 %v99
    %v363 = vunpack.c.l.b16 %v100
    %v364 = vunpack.c.l.b16 %v101
    %v365 = vunpack.c.l.b16 %v102
    %v366 = vunpack.c.l.b16 %v103
    %v367 = vunpack.c.l.b16 %v104
    %v368 = vunpack.c.l.b16 %v105
    %v369 = vunpack.c.l.b16 %v106
    %v370 = vunpack.c.l.b16 %v107
    %v371 = vunpack.c.l.b16 %v108
    %v372 = vunpack.c.l.b16 %v109
    %v373 = vunpack.c.l.b16 %v110
    %v374 = vunpack.c.l.b16 %v111
    %v375 = vunpack.c.l.b16 %v112
    %v376 = vunpack.c.l.b16 %v113
    %v377 = vunpack.c.l.b16 %v114
    %v378 = vunpack.c.l.b16 %v115
    %v379 = vunpack.c.l.b16 %v116
    %v380 = vunpack.c.l.b16 %v117
    %v381 = vunpack.c.l.b16 %v118
    %v382 = vunpack.c.l.b16 %v119
    %v383 = vunpack.c.l.b16 %v120
    %v384 = vunpack.c.l.b16 %v121
    %v385 = vunpack.c.l.b16 %v122
    %v386 = vunpack.c.l.b16 %v123
    %v387 = vunpack.c.l.b16 %v124
    %v388 = vunpack.c.l.b16 %v125
    %v389 = vunpack.c.l.b16 %v126
    %v390 = vunpack.c.l.b16 %v127
    %v391 = vunpack.c.l.b16 %v128
    %v392 = vunpack.c.l.b16 %v129
    %v393 = vunpack.c.l.b16 %v130
    %v394 = vunpack.c.l.b16 %v131
    %v395 = vunpack.c.l.b16 %v132
    %v396 = vunpack.c.l.b16 %v133
    %v397 = vunpack.c.l.b16 %v134
    %v398 = vunpack.c.l.b16 %v135
    %v399 = vunpack.c.l.b16 %v136
    %v400 = vunpack.c.l.b16 %v137
    %v401 = vunpack.c.l.b16 %v138
    %v402 = vunpack.c.l.b16 %v139
    %v403 = vunpack.c.l.b16 %v140
    %v404 = vunpack.c.l.b16 %v141
    %v405 = vunpack.c.l.b16 %v142
    %v406 = vunpack.c.l.b16 %v143
    %v407 = vunpack.c.l.b16 %v144
    %v408 = vunpack.c.l.b16 %v145
    %v409 = vunpack.c.l.b16 %v146
    %v410 = vunpack.c.l.b16 %v147
    %v411 = vunpack.c.l.b16 %v148
    %v412 = vunpack.c.l.b16 %v149
    %v413 = vunpack.c.l.b16 %v150
    %v414 = vunpack.c.l.b16 %v151
    %v415 = vunpack.c.l.b16 %v152
    %v416 = vunpack.c.l.b16 %v153
    %v417 = vunpack.c.l.b16 %v154
    %v418 = vunpack.c.l.b16 %v155
    %v419 = vunpack.c.l.b16 %v156
    %v420 = vunpack.c.l.b16 %v157
    %v421 = vunpack.c.l.b16 %v158
    %v422 = vunpack.c.l.b16 %v159
    %v423 = vunpack.c.l.b16 %v160
    %v424 = vunpack.c.l.b16 %v161
    %v425 = vunpack.c.l.b16 %v162
    %v426 = vunpack.c.l.b16 %v163
    %v427 = vunpack.c.l.b16 %v164
    %v428 = vunpack.c.l.b16 %v165
    %v429 = vunpack.c.l.b16 %v166
    %v430 = vunpack.c.l.b16 %v167
    %v431 = vunpack.c.l.b16 %v168
    %v432 = vunpack.c.l.b16 %v169
    %v433 = vunpack.c.l.b16 %v170
    %v434 = vunpack.c.l.b16 %v171
    %v435 = vunpack.c.l.b16 %v172
    %v436 = vunpack.c.l.b16 %v173
    %v437 = vunpack.c.l.b16 %v174
    %v438 = vunpack.c.l.b16 %v175
    %v439 = vunpack.c.l.b16 %v176
    %v440 = vunpack.c.l.b16 %v177
    %v441 = vunpack.c.l.b16 %v178
    %v442 = vunpack.c.l.b16 %v179
    %v443 = vunpack.c.l.b16 %v180
    %v444 = vunpack.c.l.b16 %v181
    %v445 = vunpack.c.l.b16 %v182
    %v446 = vunpack.c.l.b16 %v183
    %v447 = vunpack.c.l.b16 %v184
    %v448 = vunpack.c.l.b16 %v185
    %v449 = vunpack.c.l.b16 %v186
    %v450 = vunpack.c.l.b16 %v187
    %v451 = vunpack.c.l.b16 %v188
    %v452 = vunpack.c.l.b16 %v189
    %v453 = vunpack.c.l.b16 %v190
    %v454 = vunpack.c.l.b16 %v191
    %v455 = vunpack.c.l.b16 %v192
    %v456 = vunpack.c.l.b16 %v193
    %v457 = vunpack.c.l.b16 %v194
    %v458 = vunpack.c.l.b16 %v195
    %v459 = vunpack.c.l.b16 %v196
    %v460 = vunpack.c.l.b16 %v197
    %v461 = vunpack.c.l.b16 %v198
    %v462 = vunpack.c.l.b16 %v199
    %v463 = vunpack.c.l.b16 %v200
    %v464 = vunpack.c.l.b16 %v201
    %v465 = vunpack.c.l.b16 %v202
    %v466 = vunpack.c.l.b16 %v203
    %v467 = vunpack.c.l.b16 %v204
    %v468 = vunpack.c.l.b16 %v205
    %v469 = vunpack.c.l.b16 %v206
    %v470 = vunpack.c.l.b16 %v207
    %v471 = vunpack.c.l.b16 %v208
    %v472 = vunpack.c.l.b16 %v209
    %v473 = vunpack.c.l.b16 %v210
    %v474 = vunpack.c.l.b16 %v211
    %v475 = vunpack.c.l.b16 %v212
    %v476 = vunpack.c.l.b16 %v213
    %v477 = vunpack.c.l.b16 %v214
    %v478 = vunpack.c.l.b16 %v215
    %v479 = vunpack.c.l.b16 %v216
    %v480 = vunpack.c.l.b16 %v217
    %v481 = vunpack.c.l.b16 %v218
    %v482 = vunpack.c.l.b16 %v219
    %v483 = vpack.c.b16 %v356, %v355
    %v484 = vpack.c.b16 %v358, %v357
    %v485 = vpack.c.b16 %v360, %v359
    %v486 = vpack.c.b16 %v362, %v361
    %v487 = vpack.c.b16 %v364, %v363
    %v488 = vpack.c.b16 %v366, %v365
    %v489 = vpack.c.b16 %v368, %v367
    %v490 = vpack.c.b16 %v370, %v369
    %v491 = vpack.c.b16 %v372, %v371
    %v492 = vpack.c.b16 %v374, %v373
    %v493 = vpack.c.b16 %v376, %v375
    %v494 = vpack.c.b16 %v378, %v377
    %v495 = vpack.c.b16 %v380, %v379
    %v496 = vpack.c.b16 %v382, %v381
    %v497 = vpack.c.b16 %v384, %v383
    %v498 = vpack.c.b16 %v386, %v385
    %v499 = vpack.c.b16 %v388, %v387
    %v500 = vpack.c.b16 %v390, %v389
    %v501 = vpack.c.b16 %v392, %v391
    %v502 = vpack.c.b16 %v394, %v393
    %v503 = vpack.c.b16 %v396, %v395
    %v504 = vpack.c.b16 %v398, %v397
    %v505 = vpack.c.b16 %v400, %v399
    %v506 = vpack.c.b16 %v402, %v401
    %v507 = vpack.c.b16 %v404, %v403
    %v508 = vpack.c.b16 %v406, %v405
    %v509 = vpack.c.b16 %v408, %v407
    %v510 = vpack.c.b16 %v410, %v409
    %v511 = vpack.c.b16 %v412, %v411
    %v512 = vpack.c.b16 %v414, %v413
    %v513 = vpack.c.b16 %v416, %v415
    %v514 = vpack.c.b16 %v418, %v417
    %v515 = vpack.c.b16 %v420, %v419
    %v516 = vpack.c.b16 %v422, %v421
    %v517 = vpack.c.b16 %v424, %v423
    %v518 = vpack.c.b16 %v426, %v425
    %v519 = vpack.c.b16 %v428, %v427
    %v520 = vpack.c.b16 %v430, %v429
    %v521 = vpack.c.b16 %v432, %v431
    %v522 = vpack.c.b16 %v434, %v433
    %v523 = vpack.c.b16 %v436, %v435
    %v524 = vpack.c.b16 %v438, %v437
    %v525 = vpack.c.b16 %v440, %v439
    %v526 = vpack.c.b16 %v442, %v441
    %v527 = vpack.c.b16 %v444, %v443
    %v528 = vpack.c.b16 %v446, %v445
    %v529 = vpack.c.b16 %v448, %v447
    %v530 = vpack.c.b16 %v450, %v449
    %v531 = vpack.c.b16 %v452, %v451
    %v532 = vpack.c.b16 %v454, %v453
    %v533 = vpack.c.b16 %v456, %v455
    %v534 = vpack.c.b16 %v458, %v457
    %v535 = vpack.c.b16 %v460, %v459
    %v536 = vpack.c.b16 %v462, %v461
    %v537 = vpack.c.b16 %v464, %v463
    %v538 = vpack.c.b16 %v466, %v465
    %v539 = vpack.c.b16 %v468, %v467
    %v540 = vpack.c.b16 %v470, %v469
    %v541 = vpack.c.b16 %v472, %v471
    %v542 = vpack.c.b16 %v474, %v473
    %v543 = vpack.c.b16 %v476, %v475
    %v544 = vpack.c.b16 %v478, %v477
    %v545 = vpack.c.b16 %v480, %v479
    %v546 = vpack.c.b16 %v482, %v481
    %611 = vmatprep.subr.bf16.mxu0 0
    %612 = vmatpush1.bf16.msra.mxu0 %v483
    %613 = vmatprep.subr.bf16.mxu0 0
    %614 = vmatpush1.bf16.msra.mxu0 %v484
    %615 = vmatprep.subr.bf16.mxu0 0
    %616 = vmatpush1.bf16.msra.mxu0 %v485
    %617 = vmatprep.subr.bf16.mxu0 0
    %618 = vmatpush1.bf16.msra.mxu0 %v486
    %619 = vmatprep.subr.bf16.mxu0 0
    %620 = vmatpush1.bf16.msra.mxu0 %v487
    %621 = vmatprep.subr.bf16.mxu0 0
    %622 = vmatpush1.bf16.msra.mxu0 %v488
    %623 = vmatprep.subr.bf16.mxu0 0
    %624 = vmatpush1.bf16.msra.mxu0 %v489
    %625 = vmatprep.subr.bf16.mxu0 0
    %626 = vmatpush1.bf16.msra.mxu0 %v490
    %627 = vmatprep.subr.bf16.mxu0 0
    %628 = vmatpush1.bf16.msra.mxu0 %v491
    %629 = vmatprep.subr.bf16.mxu0 0
    %630 = vmatpush1.bf16.msra.mxu0 %v492
    %631 = vmatprep.subr.bf16.mxu0 0
    %632 = vmatpush1.bf16.msra.mxu0 %v493
    %633 = vmatprep.subr.bf16.mxu0 0
    %634 = vmatpush1.bf16.msra.mxu0 %v494
    %635 = vmatprep.subr.bf16.mxu0 0
    %636 = vmatpush1.bf16.msra.mxu0 %v495
    %637 = vmatprep.subr.bf16.mxu0 0
    %638 = vmatpush1.bf16.msra.mxu0 %v496
    %639 = vmatprep.subr.bf16.mxu0 0
    %640 = vmatpush1.bf16.msra.mxu0 %v497
    %641 = vmatprep.subr.bf16.mxu0 0
    %642 = vmatpush1.bf16.msra.mxu0 %v498
    %643 = vmatprep.mubr.bf16.mxu0 %v85
    %644 = vmatmul.mubr.bf16.gmra.mrb[0].mxu0 %v84
    %v645 = vpop.f32.mrb[0].mxu0
    %v646 = vadd.f32 %v225, %v645
    %v647 = vpop.f32.mrb[0].mxu0
    %v648 = vpop.f32.mrb[0].mxu0
    %v649 = vpop.f32.mrb[0].mxu0
    %650 = vdwg.mxu0
    %651 = vmatprep.subr.bf16.mxu0 0
    %652 = vmatpush1.bf16.msra.mxu0 %v499
    %653 = vmatprep.subr.bf16.mxu0 0
    %654 = vmatpush1.bf16.msra.mxu0 %v500
    %655 = vmatprep.subr.bf16.mxu0 0
    %656 = vmatpush1.bf16.msra.mxu0 %v501
    %657 = vmatprep.subr.bf16.mxu0 0
    %658 = vmatpush1.bf16.msra.mxu0 %v502
    %659 = vmatprep.subr.bf16.mxu0 0
    %660 = vmatpush1.bf16.msra.mxu0 %v503
    %661 = vmatprep.subr.bf16.mxu0 0
    %662 = vmatpush1.bf16.msra.mxu0 %v504
    %663 = vmatprep.subr.bf16.mxu0 0
    %664 = vmatpush1.bf16.msra.mxu0 %v505
    %665 = vmatprep.subr.bf16.mxu0 0
    %666 = vmatpush1.bf16.msra.mxu0 %v506
    %667 = vmatprep.subr.bf16.mxu0 0
    %668 = vmatpush1.bf16.msra.mxu0 %v507
    %669 = vmatprep.subr.bf16.mxu0 0
    %670 = vmatpush1.bf16.msra.mxu0 %v508
    %671 = vmatprep.subr.bf16.mxu0 0
    %672 = vmatpush1.bf16.msra.mxu0 %v509
    %673 = vmatprep.subr.bf16.mxu0 0
    %674 = vmatpush1.bf16.msra.mxu0 %v510
    %675 = vmatprep.subr.bf16.mxu0 0
    %676 = vmatpush1.bf16.msra.mxu0 %v511
    %677 = vmatprep.subr.bf16.mxu0 0
    %678 = vmatpush1.bf16.msra.mxu0 %v512
    %679 = vmatprep.subr.bf16.mxu0 0
    %680 = vmatpush1.bf16.msra.mxu0 %v513
    %681 = vmatprep.subr.bf16.mxu0 0
    %682 = vmatpush1.bf16.msra.mxu0 %v514
    %683 = vmatprep.mubr.bf16.mxu0 %v87
    %684 = vmatmul.mubr.bf16.gmra.mrb[0].mxu0 %v86
    %v685 = vpop.f32.mrb[0].mxu0
    %v686 = vadd.f32 %v646, %v685
    %v687 = vpop.f32.mrb[0].mxu0
    %v688 = vpop.f32.mrb[0].mxu0
    %v689 = vpop.f32.mrb[0].mxu0
    %690 = vdwg.mxu0
    %691 = vmatprep.subr.bf16.mxu0 0
    %692 = vmatpush1.bf16.msra.mxu0 %v515
    %693 = vmatprep.subr.bf16.mxu0 0
    %694 = vmatpush1.bf16.msra.mxu0 %v516
    %695 = vmatprep.subr.bf16.mxu0 0
    %696 = vmatpush1.bf16.msra.mxu0 %v517
    %697 = vmatprep.subr.bf16.mxu0 0
    %698 = vmatpush1.bf16.msra.mxu0 %v518
    %699 = vmatprep.subr.bf16.mxu0 0
    %700 = vmatpush1.bf16.msra.mxu0 %v519
    %701 = vmatprep.subr.bf16.mxu0 0
    %702 = vmatpush1.bf16.msra.mxu0 %v520
    %703 = vmatprep.subr.bf16.mxu0 0
    %704 = vmatpush1.bf16.msra.mxu0 %v521
    %705 = vmatprep.subr.bf16.mxu0 0
    %706 = vmatpush1.bf16.msra.mxu0 %v522
    %707 = vmatprep.subr.bf16.mxu0 0
    %708 = vmatpush1.bf16.msra.mxu0 %v523
    %709 = vmatprep.subr.bf16.mxu0 0
    %710 = vmatpush1.bf16.msra.mxu0 %v524
    %711 = vmatprep.subr.bf16.mxu0 0
    %712 = vmatpush1.bf16.msra.mxu0 %v525
    %713 = vmatprep.subr.bf16.mxu0 0
    %714 = vmatpush1.bf16.msra.mxu0 %v526
    %715 = vmatprep.subr.bf16.mxu0 0
    %716 = vmatpush1.bf16.msra.mxu0 %v527
    %717 = vmatprep.subr.bf16.mxu0 0
    %718 = vmatpush1.bf16.msra.mxu0 %v528
    %719 = vmatprep.subr.bf16.mxu0 0
    %720 = vmatpush1.bf16.msra.mxu0 %v529
    %721 = vmatprep.subr.bf16.mxu0 0
    %722 = vmatpush1.bf16.msra.mxu0 %v530
    %723 = vmatprep.mubr.bf16.mxu0 %v89
    %724 = vmatmul.mubr.bf16.gmra.mrb[0].mxu0 %v88
    %v725 = vpop.f32.mrb[0].mxu0
    %v726 = vadd.f32 %v686, %v725
    %v727 = vpop.f32.mrb[0].mxu0
    %v728 = vpop.f32.mrb[0].mxu0
    %v729 = vpop.f32.mrb[0].mxu0
    %730 = vdwg.mxu0
    %731 = vmatprep.subr.bf16.mxu0 0
    %732 = vmatpush1.bf16.msra.mxu0 %v531
    %733 = vmatprep.subr.bf16.mxu0 0
    %734 = vmatpush1.bf16.msra.mxu0 %v532
    %735 = vmatprep.subr.bf16.mxu0 0
    %736 = vmatpush1.bf16.msra.mxu0 %v533
    %737 = vmatprep.subr.bf16.mxu0 0
    %738 = vmatpush1.bf16.msra.mxu0 %v534
    %739 = vmatprep.subr.bf16.mxu0 0
    %740 = vmatpush1.bf16.msra.mxu0 %v535
    %741 = vmatprep.subr.bf16.mxu0 0
    %742 = vmatpush1.bf16.msra.mxu0 %v536
    %743 = vmatprep.subr.bf16.mxu0 0
    %744 = vmatpush1.bf16.msra.mxu0 %v537
    %745 = vmatprep.subr.bf16.mxu0 0
    %746 = vmatpush1.bf16.msra.mxu0 %v538
    %747 = vmatprep.subr.bf16.mxu0 0
    %748 = vmatpush1.bf16.msra.mxu0 %v539
    %749 = vmatprep.subr.bf16.mxu0 0
    %750 = vmatpush1.bf16.msra.mxu0 %v540
    %751 = vmatprep.subr.bf16.mxu0 0
    %752 = vmatpush1.bf16.msra.mxu0 %v541
    %753 = vmatprep.subr.bf16.mxu0 0
    %754 = vmatpush1.bf16.msra.mxu0 %v542
    %755 = vmatprep.subr.bf16.mxu0 0
    %756 = vmatpush1.bf16.msra.mxu0 %v543
    %757 = vmatprep.subr.bf16.mxu0 0
    %758 = vmatpush1.bf16.msra.mxu0 %v544
    %759 = vmatprep.subr.bf16.mxu0 0
    %760 = vmatpush1.bf16.msra.mxu0 %v545
    %761 = vmatprep.subr.bf16.mxu0 0
    %762 = vmatpush1.bf16.msra.mxu0 %v546
    %763 = vmatprep.mubr.bf16.mxu0 %v91
    %764 = vmatmul.mubr.bf16.gmra.mrb[0].mxu0 %v90
    %v765 = vpop.f32.mrb[0].mxu0
    %v766 = vadd.f32 %v726, %v765
    %v767 = vpop.f32.mrb[0].mxu0
    %v768 = vpop.f32.mrb[0].mxu0
    %v769 = vpop.f32.mrb[0].mxu0
    %770 = vdwg.mxu0
    %v771 = vmax.f32 %v766, 0.0
    %v772 = vpack.c.bf16 %v771, %v771
    %v773 = vld [vmem:[%s3] sm:$0xf]
    %v774 = vld [vmem:[%s3 + $0x4] sm:$0xf]
    %v775 = vld [vmem:[%s3 + $0x8] sm:$0xf]
    %v776 = vld [vmem:[%s3 + $0xc] sm:$0xf]
    %v777 = vld [vmem:[%s3 + $0x10] sm:$0xf]
    %v778 = vld [vmem:[%s3 + $0x14] sm:$0xf]
    %v779 = vld [vmem:[%s3 + $0x18] sm:$0xf]
    %v780 = vld [vmem:[%s3 + $0x1c] sm:$0xf]
    %v781 = vld [vmem:[%s4] sm:$0x1]
    %v783 = vlaneseq
    %v784 = vshrl.u32 %v783, 7
    %v785 = vsub.s32 0, %v784
    %v786 = vrot.slane %v781, %v785
    %v796 = vunpack.c.l.b16 %v773
    %v797 = vunpack.c.l.b16 %v774
    %v798 = vunpack.c.l.b16 %v775
    %v799 = vunpack.c.l.b16 %v776
    %v800 = vunpack.c.l.b16 %v777
    %v801 = vunpack.c.l.b16 %v778
    %v802 = vunpack.c.l.b16 %v779
    %v803 = vunpack.c.l.b16 %v780
    %v804 = vpack.c.b16 %v797, %v796
    %v805 = vpack.c.b16 %v799, %v798
    %v806 = vpack.c.b16 %v801, %v800
    %v807 = vpack.c.b16 %v803, %v802
    %vm812 = vcmask 523264
    %v814 = vsel %vm812, %v772, 0
    %816 = vmatprep.subr.bf16.mxu0 0
    %817 = vmatpush1.bf16.msra.mxu0 %v804
    %818 = vmatprep.subr.bf16.mxu0 0
    %819 = vmatpush1.bf16.msra.mxu0 %v805
    %820 = vmatprep.subr.bf16.mxu0 0
    %821 = vmatpush1.bf16.msra.mxu0 %v806
    %822 = vmatprep.subr.bf16.mxu0 0
    %823 = vmatpush1.bf16.msra.mxu0 %v807
    %824 = vmatprep.subr.bf16.mxu0 0
    %825 = vmatpush1.bf16.msra.mxu0 0
    %826 = vmatprep.subr.bf16.mxu0 0
    %827 = vmatpush1.bf16.msra.mxu0 0
    %828 = vmatprep.subr.bf16.mxu0 0
    %829 = vmatpush1.bf16.msra.mxu0 0
    %830 = vmatprep.subr.bf16.mxu0 0
    %831 = vmatpush1.bf16.msra.mxu0 0
    %832 = vmatprep.subr.bf16.mxu0 0
    %833 = vmatpush1.bf16.msra.mxu0 0
    %834 = vmatprep.subr.bf16.mxu0 0
    %835 = vmatpush1.bf16.msra.mxu0 0
    %836 = vmatprep.subr.bf16.mxu0 0
    %837 = vmatpush1.bf16.msra.mxu0 0
    %838 = vmatprep.subr.bf16.mxu0 0
    %839 = vmatpush1.bf16.msra.mxu0 0
    %840 = vmatprep.subr.bf16.mxu0 0
    %841 = vmatpush1.bf16.msra.mxu0 0
    %842 = vmatprep.subr.bf16.mxu0 0
    %843 = vmatpush1.bf16.msra.mxu0 0
    %844 = vmatprep.subr.bf16.mxu0 0
    %845 = vmatpush1.bf16.msra.mxu0 0
    %846 = vmatprep.subr.bf16.mxu0 0
    %847 = vmatpush1.bf16.msra.mxu0 0
    %848 = vmatprep.mubr.bf16.mxu0 0
    %849 = vmatmul.mubr.bf16.gmra.mrb[0].mxu0 %v814
    %v850 = vpop.f32.mrb[0].mxu0
    %v851 = vadd.f32 %v786, %v850
    %v852 = vpop.f32.mrb[0].mxu0
    %v853 = vpop.f32.mrb[0].mxu0
    %v854 = vpop.f32.mrb[0].mxu0
    %855 = vdwg.mxu0
    %vm856 = vcmask 254976
    %857 = vst.msk [vmem:[#allocation4] sm:$0x3] %vm856, %v851
    %v858 = vld [vmem:[%s5] sm:$0xff]
    %v859 = vld [vmem:[%s5 + $0x8] sm:$0xff]
    %v860 = vld [vmem:[%s6] sm:$0x1]
    %v862 = vrot.slane %v851, 6
    %863 = vrot.lane.b32.xlu0 %v862, 112
    %v864 = vpop.permute.xlu0 %863
    %vm866 = vcmask 1041408
    %v867 = vsel %vm866, %v851, %v864
    %v868 = vmul.f32 %v867, %v867
    %vm869 = vcmask 125952
    %v870 = vsel %vm869, %v868, 0.0
    %871 = vadd.xlane.f32.xlu0 %v870
    %v872 = vpop.xlane.xlu0 %871
    %v873 = vpack.c.bf16 %v867, %v867
    %v874 = vpack.c.bf16 %v859, %v858
    %vm875 = vcmask 130048
    %v877 = vsel %vm875, %v873, 0
    %v880 = vsel %vm875, %v874, 0
    %882 = vmatprep.subr.bf16.mxu0 0
    %883 = vmatpush1.bf16.xpose.msra.mxu0 %v880
    %884 = vmatprep.subr.bf16.mxu0 0
    %885 = vmatpush1.bf16.xpose.msra.mxu0 0
    %886 = vmatprep.subr.bf16.mxu0 0
    %887 = vmatpush1.bf16.xpose.msra.mxu0 0
    %888 = vmatprep.subr.bf16.mxu0 0
    %889 = vmatpush1.bf16.xpose.msra.mxu0 0
    %890 = vmatprep.subr.bf16.mxu0 0
    %891 = vmatpush1.bf16.xpose.msra.mxu0 0
    %892 = vmatprep.subr.bf16.mxu0 0
    %893 = vmatpush1.bf16.xpose.msra.mxu0 0
    %894 = vmatprep.subr.bf16.mxu0 0
    %895 = vmatpush1.bf16.xpose.msra.mxu0 0
    %896 = vmatprep.subr.bf16.mxu0 0
    %897 = vmatpush1.bf16.xpose.msra.mxu0 0
    %898 = vmatprep.subr.bf16.mxu0 0
    %899 = vmatpush1.bf16.xpose.msra.mxu0 0
    %900 = vmatprep.subr.bf16.mxu0 0
    %901 = vmatpush1.bf16.xpose.msra.mxu0 0
    %902 = vmatprep.subr.bf16.mxu0 0
    %903 = vmatpush1.bf16.xpose.msra.mxu0 0
    %904 = vmatprep.subr.bf16.mxu0 0
    %905 = vmatpush1.bf16.xpose.msra.mxu0 0
    %906 = vmatprep.subr.bf16.mxu0 0
    %907 = vmatpush1.bf16.xpose.msra.mxu0 0
    %908 = vmatprep.subr.bf16.mxu0 0
    %909 = vmatpush1.bf16.xpose.msra.mxu0 0
    %910 = vmatprep.subr.bf16.mxu0 0
    %911 = vmatpush1.bf16.xpose.msra.mxu0 0
    %912 = vmatprep.subr.bf16.mxu0 0
    %913 = vmatpush1.bf16.xpose.msra.mxu0 0
    %914 = vmatprep.mubr.bf16.mxu0 0
    %915 = vmatmul.mubr.bf16.gmra.mrb[0].mxu0 %v877
    %v916 = vpop.f32.mrb[0].mxu0
    %v917 = vadd.f32 0.0, %v916
    %v918 = vpop.f32.mrb[0].mxu0
    %v919 = vpop.f32.mrb[0].mxu0
    %v920 = vpop.f32.mrb[0].mxu0
    %921 = vdwg.mxu0
    %v923 = vlaneseq
    %v924 = vshrl.u32 %v923, 7
    %v925 = vsub.s32 0, %v924
    %v926 = vrot.slane %v860, %v925
    %v928 = vadd.f32 %v872, %v926
    %v929 = vmul.f32 %v917, 2.0
    %v930 = vsub.f32 %v928, %v929
    %v931 = vsub.f32 0.0, %v930
    %v932 = vld [vmem:[%s7] sm:$0xf]
    %v933 = vadd.f32 %v931, %v932
    %v934 = vsel %vm869, %v933, -inf
    %935 = vmax.xlane.f32.xlu0 %v934
    %v936 = vpop.xlane.xlu0 %935
    %v937 = vsub.f32 %v933, %v936
    %v938 = vmul.f32 %v937, 1.442695
    %v939 = vpow.pop %v938
    %v940 = vsel %vm869, %v939, 0.0
    %941 = vadd.xlane.f32.xlu0 %v940
    %v942 = vpop.xlane.xlu0 %941
    %v943 = vlog2.pop %v942
    %v944 = vmul.f32 %v943, 0.6931472
    %v945 = vsub.f32 %v937, %v944
    %v946 = vrcp.pop %v942
    %v947 = vmul.f32 %v939, %v946
    %v948 = vlaneseq
    %v949 = vand.u32 %v948, 127
    %vm950 = vcmp.eq.f32.partialorder %v933, %v936
    %v951 = vsel %vm950, %v949, 16
    %v952 = vsel %vm869, %v951, 2147483647
    %v953 = vand.u32 %v952, 65535
    %v954 = vshra.s32 %v952, 16
    %v955 = vcvt.s32.f32 %v953
    %v956 = vcvt.s32.f32 %v954
    %957 = vmin.xlane.f32.xlu0 %v956
    %v958 = vpop.xlane.xlu0 %957
    %vm959 = vcmp.eq.f32.partialorder %v956, %v958
    %v960 = vsel %vm959, %v955, inf
    %961 = vmin.xlane.f32.xlu0 %v960
    %v962 = vpop.xlane.xlu0 %961
    %v963 = vcvt.f32.s32 %v962
    %v964 = vcvt.f32.s32 %v958
    %v965 = vshll.u32 %v964, 16
    %v966 = vadd.s32 %v965, %v963
    %vm967 = vcmp.eq.s32.totalorder %v949, %v966
    %v968 = vsel %vm967, 1, 0
    %v969 = vcvt.s32.f32 %v968
    %v971 = vsel %vm875, %v969, 0
    %973 = vmatprep.subr.mxu0 0.0
    %974 = vmatpush1.msra.mxu0 %v858
    %975 = vmatprep.subr.mxu0 0.0
    %976 = vmatpush1.msra.mxu0 %v859
    %977 = vmatprep.subr.mxu0 0.0
    %978 = vmatpush1.msra.mxu0 0.0
    %979 = vmatprep.subr.mxu0 0.0
    %980 = vmatpush1.msra.mxu0 0.0
    %981 = vmatprep.subr.mxu0 0.0
    %982 = vmatpush1.msra.mxu0 0.0
    %983 = vmatprep.subr.mxu0 0.0
    %984 = vmatpush1.msra.mxu0 0.0
    %985 = vmatprep.subr.mxu0 0.0
    %986 = vmatpush1.msra.mxu0 0.0
    %987 = vmatprep.subr.mxu0 0.0
    %988 = vmatpush1.msra.mxu0 0.0
    %989 = vmatprep.subr.mxu0 0.0
    %990 = vmatpush1.msra.mxu0 0.0
    %991 = vmatprep.subr.mxu0 0.0
    %992 = vmatpush1.msra.mxu0 0.0
    %993 = vmatprep.subr.mxu0 0.0
    %994 = vmatpush1.msra.mxu0 0.0
    %995 = vmatprep.subr.mxu0 0.0
    %996 = vmatpush1.msra.mxu0 0.0
    %997 = vmatprep.subr.mxu0 0.0
    %998 = vmatpush1.msra.mxu0 0.0
    %999 = vmatprep.subr.mxu0 0.0
    %1000 = vmatpush1.msra.mxu0 0.0
    %1001 = vmatprep.subr.mxu0 0.0
    %1002 = vmatpush1.msra.mxu0 0.0
    %1003 = vmatprep.subr.mxu0 0.0
    %1004 = vmatpush1.msra.mxu0 0.0
    %1005 = vmatprep.subr.mxu0 0.0
    %1006 = vmatpush1.msra.mxu0 0.0
    %1007 = vmatprep.subr.mxu0 0.0
    %1008 = vmatpush1.msra.mxu0 0.0
    %1009 = vmatprep.subr.mxu0 0.0
    %1010 = vmatpush1.msra.mxu0 0.0
    %1011 = vmatprep.subr.mxu0 0.0
    %1012 = vmatpush1.msra.mxu0 0.0
    %1013 = vmatprep.subr.mxu0 0.0
    %1014 = vmatpush1.msra.mxu0 0.0
    %1015 = vmatprep.subr.mxu0 0.0
    %1016 = vmatpush1.msra.mxu0 0.0
    %1017 = vmatprep.subr.mxu0 0.0
    %1018 = vmatpush1.msra.mxu0 0.0
    %1019 = vmatprep.subr.mxu0 0.0
    %1020 = vmatpush1.msra.mxu0 0.0
    %1021 = vmatprep.subr.mxu0 0.0
    %1022 = vmatpush1.msra.mxu0 0.0
    %1023 = vmatprep.subr.mxu0 0.0
    %1024 = vmatpush1.msra.mxu0 0.0
    %1025 = vmatprep.subr.mxu0 0.0
    %1026 = vmatpush1.msra.mxu0 0.0
    %1027 = vmatprep.subr.mxu0 0.0
    %1028 = vmatpush1.msra.mxu0 0.0
    %1029 = vmatprep.subr.mxu0 0.0
    %1030 = vmatpush1.msra.mxu0 0.0
    %1031 = vmatprep.subr.mxu0 0.0
    %1032 = vmatpush1.msra.mxu0 0.0
    %1033 = vmatprep.subr.mxu0 0.0
    %1034 = vmatpush1.msra.mxu0 0.0
    %1035 = vmatprep.subr.mxu0 0.0
    %1036 = vmatpush1.msra.mxu0 0.0
    %1037 = vmatprep.mubr.f32.mxu0 0.0
    %1038 = vmatmul.mubr.f32.gmra.mrb[0].mxu0 %v971
    %v1039 = vpop.f32.mrb[0].mxu0
    %v1040 = vadd.f32 0.0, %v1039
    %v1041 = vpop.f32.mrb[0].mxu0
    %1042 = vdwg.mxu0
    %v1044 = vrot.slane %v1040, 2
    %1045 = vrot.lane.b32.xlu0 %v1044, 16
    %v1046 = vpop.permute.xlu0 %1045
    %v1048 = vsel %vm875, %v1040, %v1046
    %1049 = vst.msk [vmem:[#allocation2] sm:$0x3] %vm856, %v1048
    %v1050 = vsel %vm869, %v947, 0.0
    %v1051 = vrot.slane %v1050, 4
    %v1052 = vadd.f32 %v1050, %v1051
    %v1053 = vrot.slane %v1052, 2
    %v1054 = vadd.f32 %v1052, %v1053
    %v1055 = vrot.slane %v1054, 1
    %v1056 = vadd.f32 %v1054, %v1055
    %vm1057 = vcmask 122880
    %1058 = vst.msk [vmem:[#allocation6] sm:$0x1] %vm1057, %v1056
    %v1059 = vsel %vm869, %v945, 0.0
    %v1060 = vrot.slane %v1059, 4
    %v1061 = vadd.f32 %v1059, %v1060
    %v1062 = vrot.slane %v1061, 2
    %v1063 = vadd.f32 %v1061, %v1062
    %v1064 = vrot.slane %v1063, 1
    %v1065 = vadd.f32 %v1063, %v1064
    %1066 = vst.msk [vmem:[#allocation7] sm:$0x1] %vm1057, %v1065
    %v1067 = vsub.f32 %v1040, %v867
    %v1068 = vmul.f32 %v1067, %v1067
    %v1069 = vsel %vm869, %v1068, 0.0
    %1070 = vadd.xlane.f32.xlu0 %v1069
    %v1071 = vpop.xlane.xlu0 %1070
    %v1072 = vrot.slane %v1071, 4
    %v1073 = vadd.f32 %v1071, %v1072
    %v1074 = vrot.slane %v1073, 2
    %v1075 = vadd.f32 %v1073, %v1074
    %v1076 = vrot.slane %v1075, 1
    %v1077 = vadd.f32 %v1075, %v1076
    %s1078 = vtos %v1077
    %v1079 = vstv %s1078
    %vm1080 = vcmask 0
    %1081 = vst.msk [vmem:[#allocation9] sm:$0x1] %vm1080, %v1079
    // Predicated region
    $region34: #{tpu_custom_call.1} parent=1 // pred_check
      _
    $region35: #{tpu_custom_call.1} parent=1 // pred_check_branch
      %1083 = sbr.rel (0) target = $region37
    $region36: #{tpu_custom_call.1} parent=1 // pred_region
      %s1085 = ssub.s32 32, 32
      %1086 = vsyncadd [#allocation3], %s1085
      %s1088 = sshll.u32 [#allocation2], 4
      %s1089 = int_to_ptr.vmem [resolvable:$true] %s1088
      %1091 = dma.vmem_to_hbm [thread:$0]  %s1089, 32, %s8, [#allocation3]
    $region37: #{tpu_custom_call.1} parent=1 // pred_fallthru
      _
    // Predicated region
    $region38: #{tpu_custom_call.1} parent=1 // pred_check
      _
    $region39: #{tpu_custom_call.1} parent=1 // pred_check_branch
      %1093 = sbr.rel (0) target = $region41
    $region40: #{tpu_custom_call.1} parent=1 // pred_region
      %s1095 = ssub.s32 32, 32
      %1096 = vsyncadd [#allocation5], %s1095
      %s1098 = sshll.u32 [#allocation4], 4
      %s1099 = int_to_ptr.vmem [resolvable:$true] %s1098
      %1101 = dma.vmem_to_hbm [thread:$0]  %s1099, 32, %s9, [#allocation5]
    $region41: #{tpu_custom_call.1} parent=1 // pred_fallthru
      _
    // Predicated region
    $region42: #{tpu_custom_call.1} parent=1 // pred_check
      _
    $region43: #{tpu_custom_call.1} parent=1 // pred_check_branch
      %1103 = sbr.rel (0) target = $region45
    $region44: #{tpu_custom_call.1} parent=1 // pred_region
      %s1105 = ssub.s32 16, 16
      %1106 = vsyncadd [#allocation5], %s1105
      %s1108 = sshll.u32 [#allocation6], 4
      %s1109 = int_to_ptr.vmem [resolvable:$true] %s1108
      %1111 = dma.vmem_to_hbm [thread:$0]  %s1109, 16, %s10, [#allocation5]
    $region45: #{tpu_custom_call.1} parent=1 // pred_fallthru
      _
    // Predicated region
    $region46: #{tpu_custom_call.1} parent=1 // pred_check
      _
    $region47: #{tpu_custom_call.1} parent=1 // pred_check_branch
      %1113 = sbr.rel (0) target = $region49
    $region48: #{tpu_custom_call.1} parent=1 // pred_region
      %s1115 = ssub.s32 16, 16
      %1116 = vsyncadd [#allocation8], %s1115
      %s1118 = sshll.u32 [#allocation7], 4
      %s1119 = int_to_ptr.vmem [resolvable:$true] %s1118
      %1121 = dma.vmem_to_hbm [thread:$0]  %s1119, 16, %s11, [#allocation8]
    $region49: #{tpu_custom_call.1} parent=1 // pred_fallthru
      _
    // Predicated region
    $region50: #{tpu_custom_call.1} parent=1 // pred_check
      _
    $region51: #{tpu_custom_call.1} parent=1 // pred_check_branch
      %1123 = sbr.rel (0) target = $region53
    $region52: #{tpu_custom_call.1} parent=1 // pred_region
      %s1125 = ssub.s32 16, 16
      %1126 = vsyncadd [#allocation8], %s1125
      %s1128 = sshll.u32 [#allocation9], 4
      %s1129 = int_to_ptr.vmem [resolvable:$true] %s1128
      %1131 = dma.vmem_to_hbm [thread:$0]  %s1129, 16, %s12, [#allocation8]
    $region53: #{tpu_custom_call.1} parent=1 // pred_fallthru
      _
    // Predicated region
    $region54: #{tpu_custom_call.1} parent=1 // pred_check
      _
    $region55: #{tpu_custom_call.1} parent=1 // pred_check_branch
      %1133 = sbr.rel (0) target = $region57
    $region56: #{tpu_custom_call.1} parent=1 // pred_region
      %1134 = dma.done [#allocation3], 32
    $region57: #{tpu_custom_call.1} parent=1 // pred_fallthru
      _
    // Predicated region
    $region58: #{tpu_custom_call.1} parent=1 // pred_check
      _
    $region59: #{tpu_custom_call.1} parent=1 // pred_check_branch
      %1136 = sbr.rel (0) target = $region61
    $region60: #{tpu_custom_call.1} parent=1 // pred_region
      %1137 = dma.done [#allocation5], 32
    $region61: #{tpu_custom_call.1} parent=1 // pred_fallthru
      _
    // Predicated region
    $region62: #{tpu_custom_call.1} parent=1 // pred_check
      _
    $region63: #{tpu_custom_call.1} parent=1 // pred_check_branch
      %1139 = sbr.rel (0) target = $region65
    $region64: #{tpu_custom_call.1} parent=1 // pred_region
      %1140 = dma.done [#allocation5], 16
    $region65: #{tpu_custom_call.1} parent=1 // pred_fallthru
      _
    // Predicated region
    $region66: #{tpu_custom_call.1} parent=1 // pred_check
      _
    $region67: #{tpu_custom_call.1} parent=1 // pred_check_branch
      %1142 = sbr.rel (0) target = $region69
    $region68: #{tpu_custom_call.1} parent=1 // pred_region
      %1143 = dma.done [#allocation8], 16
    $region69: #{tpu_custom_call.1} parent=1 // pred_fallthru
      _
    // Predicated region
    $region70: #{tpu_custom_call.1} parent=1 // pred_check
      _
    $region71: #{tpu_custom_call.1} parent=1 // pred_check_branch
      %1145 = sbr.rel (0) target = $region73
    $region72: #{tpu_custom_call.1} parent=1 // pred_region
      %1146 = dma.done [#allocation8], 16
    $region73: #{tpu_custom_call.1} parent=1 // pred_fallthru
      _
    %1147 = vsyncpa [#allocation3], 1
    %1148 = vsyncpa [#allocation5], 1
    %1149 = vsyncpa [#allocation8], 1

</llo_original>
